<compile_context>
chip_gen: v7x
topology: tpu7x:2x2x1
jax: 0.10.0
libtpu: 0.0.40
codegen_flags: <defaults>
</compile_context>

<pallas_src>
import jax
import jax.numpy as jnp
from jax.experimental import pallas as pl
from jax.experimental.pallas import tpu as pltpu

EPS = 1e-5
LANE = 128


def _round_up(x, m):
    return ((x + m - 1) // m) * m


def tabresnet_kernel(
    x_ref,        # (TILE_B, K_pad)   bf16
    emb_w_ref,    # (K_pad, D)        bf16
    fc1_w_ref,    # (D, D)            bf16  (bn1 folded in)
    fc2_w_ref,    # (D, D)            bf16
    fc_w_ref,     # (D, OUT_pad)      bf16
    vec_ref,      # (8, D)            f32   packed per-feature vectors
    fcb_ref,      # (1, OUT_pad)      f32
    out_ref,      # (TILE_B, OUT_pad) f32
):
    emb_b = vec_ref[0:1, :]
    fc1_b = vec_ref[1:2, :]   # fc1 bias with bn1 shift folded in
    fc2_b = vec_ref[2:3, :]
    bn2_sc = vec_ref[3:4, :]  # gamma2 * rsqrt(var2 + eps)
    bn2_sh = vec_ref[4:5, :]  # beta2 - mean2 * bn2_sc

    # embedding: Linear(in_features -> embedding_dim)
    h = jnp.dot(x_ref[...], emb_w_ref[...],
                preferred_element_type=jnp.float32) + emb_b

    # --- ResNetBlock (num_blocks = 1), BN1 folded into fc1, Dropout = id ---
    y = jnp.dot(h.astype(jnp.bfloat16), fc1_w_ref[...],
                preferred_element_type=jnp.float32) + fc1_b
    y = jnp.maximum(y, 0.0)
    y = jnp.dot(y.astype(jnp.bfloat16), fc2_w_ref[...],
                preferred_element_type=jnp.float32) + fc2_b
    h = h + y  # residual add in f32

    # final BatchNorm1d (eval -> scale/shift FMA) + relu
    hn = jnp.maximum(h * bn2_sc + bn2_sh, 0.0)

    # head: Linear(embedding_dim -> out_features), lane-dense padded output
    out_ref[...] = (
        jnp.dot(hn.astype(jnp.bfloat16), fc_w_ref[...],
                preferred_element_type=jnp.float32)
        + fcb_ref[...]
    )


def tabresnet_forward(x, params, tile_b=1024):
    """x: (B, in_features) f32.  Returns (B, out_features) f32."""
    B, K = x.shape
    D = params["emb_w"].shape[1]
    OUT = params["fc_w"].shape[1]

    K_pad = _round_up(max(K, LANE), LANE)
    OUT_pad = _round_up(max(OUT, LANE), LANE)
    tile_b = min(tile_b, _round_up(B, 8))      # small batches: single tile
    B_pad = _round_up(B, tile_b)
    grid = (B_pad // tile_b,)

    # --- fold eval-mode BatchNorms (constant math, done once in the wrapper) ---
    s1 = params["bn1_g"] / jnp.sqrt(params["bn1_v"] + EPS)          # (1, D)
    t1 = params["bn1_b"] - params["bn1_m"] * s1                     # (1, D)
    fc1_w_f = s1.T * params["fc1_w"]                                # scale rows
    fc1_b_f = params["fc1_b"] + t1 @ params["fc1_w"]                # (1, D)

    s2 = params["bn2_g"] / jnp.sqrt(params["bn2_v"] + EPS)          # (1, D)
    t2 = params["bn2_b"] - params["bn2_m"] * s2                     # (1, D)

    # --- pad to lane-dense shapes, cast matmul operands to bf16 ---
    x_p = (jnp.zeros((B_pad, K_pad), jnp.float32)
           .at[:B, :K].set(x).astype(jnp.bfloat16))
    emb_w = (jnp.zeros((K_pad, D), jnp.float32)
             .at[:K, :].set(params["emb_w"]).astype(jnp.bfloat16))
    fc1_w = fc1_w_f.astype(jnp.bfloat16)
    fc2_w = params["fc2_w"].astype(jnp.bfloat16)
    fc_w = (jnp.zeros((D, OUT_pad), jnp.float32)
            .at[:, :OUT].set(params["fc_w"]).astype(jnp.bfloat16))
    fc_b = jnp.zeros((1, OUT_pad), jnp.float32).at[:, :OUT].set(params["fc_b"])

    # pack the remaining (1, D) vectors into one (8, D) f32 tile
    vecs = jnp.zeros((8, D), jnp.float32)
    vecs = vecs.at[0].set(params["emb_b"][0])
    vecs = vecs.at[1].set(fc1_b_f[0])
    vecs = vecs.at[2].set(params["fc2_b"][0])
    vecs = vecs.at[3].set(s2[0])
    vecs = vecs.at[4].set(t2[0])

    out = pl.pallas_call(
        tabresnet_kernel,
        out_shape=jax.ShapeDtypeStruct((B_pad, OUT_pad), jnp.float32),
        grid=grid,
        in_specs=[
            pl.BlockSpec((tile_b, K_pad), lambda i: (i, 0)),   # x: tiled over batch
            pl.BlockSpec((K_pad, D), lambda i: (0, 0)),        # weights: VMEM-resident
            pl.BlockSpec((D, D), lambda i: (0, 0)),
            pl.BlockSpec((D, D), lambda i: (0, 0)),
            pl.BlockSpec((D, OUT_pad), lambda i: (0, 0)),
            pl.BlockSpec((8, D), lambda i: (0, 0)),
            pl.BlockSpec((1, OUT_pad), lambda i: (0, 0)),
        ],
        out_specs=pl.BlockSpec((tile_b, OUT_pad), lambda i: (i, 0)),
        compiler_params=pltpu.CompilerParams(
            dimension_semantics=("parallel",),   # shards batch across v7x's 2 TCs
            vmem_limit_bytes=32 << 20,           # safe on v5e/v6e/v7x
        ),
    )(x_p, emb_w, fc1_w, fc2_w, fc_w, vecs, fc_b)

    return out[:B, :OUT]


def init_params(key, in_features, out_features, embedding_dim):
    """Deterministic synthetic parameters (PyTorch-like uniform init).

    Linear weights are stored transposed: shape (in, out).
    Biases / BN params are stored as (1, D).
    """
    keys = jax.random.split(key, 16)

    def linear(kw, kb, fan_in, fan_out):
        bound = 1.0 / jnp.sqrt(jnp.float32(fan_in))
        w = jax.random.uniform(kw, (fan_in, fan_out), jnp.float32, -bound, bound)
        b = jax.random.uniform(kb, (1, fan_out), jnp.float32, -bound, bound)
        return w, b

    emb_w, emb_b = linear(keys[0], keys[1], in_features, embedding_dim)
    fc1_w, fc1_b = linear(keys[2], keys[3], embedding_dim, embedding_dim)
    fc2_w, fc2_b = linear(keys[4], keys[5], embedding_dim, embedding_dim)
    fc_w, fc_b = linear(keys[6], keys[7], embedding_dim, out_features)

    def bn(km, kv):
        g = jnp.ones((1, embedding_dim), jnp.float32)
        b = jnp.zeros((1, embedding_dim), jnp.float32)
        m = 0.1 * jax.random.normal(km, (1, embedding_dim), jnp.float32)
        v = 1.0 + 0.1 * jnp.abs(jax.random.normal(kv, (1, embedding_dim), jnp.float32))
        return g, b, m, v

    bn1_g, bn1_b, bn1_m, bn1_v = bn(keys[8], keys[9])
    bn2_g, bn2_b, bn2_m, bn2_v = bn(keys[10], keys[11])

    return dict(
        emb_w=emb_w, emb_b=emb_b,
        bn1_g=bn1_g, bn1_b=bn1_b, bn1_m=bn1_m, bn1_v=bn1_v,
        fc1_w=fc1_w, fc1_b=fc1_b,
        fc2_w=fc2_w, fc2_b=fc2_b,
        bn2_g=bn2_g, bn2_b=bn2_b, bn2_m=bn2_m, bn2_v=bn2_v,
        fc_w=fc_w, fc_b=fc_b,
    )


def reference_forward(x, p):
    """Plain-JAX f32 reference matching the PyTorch module in eval mode."""
    h = x @ p["emb_w"] + p["emb_b"]
    hn = (h - p["bn1_m"]) / jnp.sqrt(p["bn1_v"] + EPS) * p["bn1_g"] + p["bn1_b"]
    y = jnp.maximum(hn @ p["fc1_w"] + p["fc1_b"], 0.0)
    y = y @ p["fc2_w"] + p["fc2_b"]
    h = h + y
    hn = (h - p["bn2_m"]) / jnp.sqrt(p["bn2_v"] + EPS) * p["bn2_g"] + p["bn2_b"]
    hn = jnp.maximum(hn, 0.0)
    return hn @ p["fc_w"] + p["fc_b"]


if __name__ == "__main__":
    B = 8
    IN_FEATURES = 32
    OUT_FEATURES = 2
    EMBEDDING_DIM = 128  # module defaults: num_blocks=1, embedding_dim=128

    key = jax.random.PRNGKey(0)
    kx, kp = jax.random.split(key)
    x = jax.random.normal(kx, (B, IN_FEATURES), jnp.float32)
    params = init_params(kp, IN_FEATURES, OUT_FEATURES, EMBEDDING_DIM)

    out = tabresnet_forward(x, params)
    out = jax.block_until_ready(out)

    ref = reference_forward(x, params)
    assert out.shape == (B, OUT_FEATURES)
    # bf16 matmul operands (f32 accumulation) -> loosened tolerance vs f32 ref
    assert jnp.allclose(out, ref, atol=5e-2, rtol=5e-2)

    print("KERNEL_OK")
</pallas_src>

<mosaic_0001>
module attributes {stable_mosaic.version = 11 : i64} {
  func.func @tabresnet_kernel(%arg0: i32, %arg1: memref<8x128xbf16, #tpu.memory_space<vmem>>, %arg2: memref<128x128xbf16, #tpu.memory_space<vmem>>, %arg3: memref<128x128xbf16, #tpu.memory_space<vmem>>, %arg4: memref<128x128xbf16, #tpu.memory_space<vmem>>, %arg5: memref<128x128xbf16, #tpu.memory_space<vmem>>, %arg6: memref<8x128xf32, #tpu.memory_space<vmem>>, %arg7: memref<1x128xf32, #tpu.memory_space<vmem>>, %arg8: memref<8x128xf32, #tpu.memory_space<vmem>>) attributes {dimension_semantics = [#tpu.dimension_semantics<parallel>], iteration_bounds = array<i64: 1>, scalar_prefetch = 0 : i64, scratch_operands = 0 : i64, tpu.core_type = #tpu.core_type<tc>, window_params = [{transform_indices = @transform_0, window_bounds = array<i64: 8, 128>}, {pipeline_mode = #tpu.pipeline_mode<synchronous>, transform_indices = @transform_1, window_bounds = array<i64: 128, 128>}, {pipeline_mode = #tpu.pipeline_mode<synchronous>, transform_indices = @transform_2, window_bounds = array<i64: 128, 128>}, {pipeline_mode = #tpu.pipeline_mode<synchronous>, transform_indices = @transform_3, window_bounds = array<i64: 128, 128>}, {pipeline_mode = #tpu.pipeline_mode<synchronous>, transform_indices = @transform_4, window_bounds = array<i64: 128, 128>}, {pipeline_mode = #tpu.pipeline_mode<synchronous>, transform_indices = @transform_5, window_bounds = array<i64: 8, 128>}, {pipeline_mode = #tpu.pipeline_mode<synchronous>, transform_indices = @transform_6, window_bounds = array<i64: 1, 128>}, {transform_indices = @transform_7, window_bounds = array<i64: 8, 128>}]} {
    %c0 = arith.constant 0 : index
    %c0_0 = arith.constant 0 : index
    %0 = vector.load %arg6[%c0, %c0_0] : memref<8x128xf32, #tpu.memory_space<vmem>>, vector<1x128xf32>
    %c1 = arith.constant 1 : index
    %c0_1 = arith.constant 0 : index
    %1 = vector.load %arg6[%c1, %c0_1] : memref<8x128xf32, #tpu.memory_space<vmem>>, vector<1x128xf32>
    %c2 = arith.constant 2 : index
    %c0_2 = arith.constant 0 : index
    %2 = vector.load %arg6[%c2, %c0_2] : memref<8x128xf32, #tpu.memory_space<vmem>>, vector<1x128xf32>
    %c3 = arith.constant 3 : index
    %c0_3 = arith.constant 0 : index
    %3 = vector.load %arg6[%c3, %c0_3] : memref<8x128xf32, #tpu.memory_space<vmem>>, vector<1x128xf32>
    %c4 = arith.constant 4 : index
    %c0_4 = arith.constant 0 : index
    %4 = vector.load %arg6[%c4, %c0_4] : memref<8x128xf32, #tpu.memory_space<vmem>>, vector<1x128xf32>
    %c0_5 = arith.constant 0 : index
    %c0_6 = arith.constant 0 : index
    %5 = vector.load %arg1[%c0_5, %c0_6] : memref<8x128xbf16, #tpu.memory_space<vmem>>, vector<8x128xbf16>
    %c0_7 = arith.constant 0 : index
    %c0_8 = arith.constant 0 : index
    %6 = vector.load %arg2[%c0_7, %c0_8] : memref<128x128xbf16, #tpu.memory_space<vmem>>, vector<128x128xbf16>
    %cst = arith.constant dense<0.000000e+00> : vector<8x128xf32>
    %7 = tpu.matmul %5, %6, %cst {dimension_numbers = #tpu.dot_dimension_numbers<[1], [0], [0], [1], [0, 0, 1, 1], [], []>} : vector<8x128xbf16>, vector<128x128xbf16>, vector<8x128xf32> -> vector<8x128xf32>
    %8 = vector.broadcast %0 : vector<1x128xf32> to vector<8x128xf32>
    %9 = arith.addf %7, %8 : vector<8x128xf32>
    %10 = arith.truncf %9 : vector<8x128xf32> to vector<8x128xbf16>
    %c0_9 = arith.constant 0 : index
    %c0_10 = arith.constant 0 : index
    %11 = vector.load %arg3[%c0_9, %c0_10] : memref<128x128xbf16, #tpu.memory_space<vmem>>, vector<128x128xbf16>
    %cst_11 = arith.constant dense<0.000000e+00> : vector<8x128xf32>
    %12 = tpu.matmul %10, %11, %cst_11 {dimension_numbers = #tpu.dot_dimension_numbers<[1], [0], [0], [1], [0, 0, 1, 1], [], []>} : vector<8x128xbf16>, vector<128x128xbf16>, vector<8x128xf32> -> vector<8x128xf32>
    %13 = vector.broadcast %1 : vector<1x128xf32> to vector<8x128xf32>
    %14 = arith.addf %12, %13 : vector<8x128xf32>
    %cst_12 = arith.constant 0.000000e+00 : f32
    %15 = vector.broadcast %cst_12 : f32 to vector<8x128xf32>
    %16 = arith.maximumf %14, %15 : vector<8x128xf32>
    %17 = arith.truncf %16 : vector<8x128xf32> to vector<8x128xbf16>
    %c0_13 = arith.constant 0 : index
    %c0_14 = arith.constant 0 : index
    %18 = vector.load %arg4[%c0_13, %c0_14] : memref<128x128xbf16, #tpu.memory_space<vmem>>, vector<128x128xbf16>
    %cst_15 = arith.constant dense<0.000000e+00> : vector<8x128xf32>
    %19 = tpu.matmul %17, %18, %cst_15 {dimension_numbers = #tpu.dot_dimension_numbers<[1], [0], [0], [1], [0, 0, 1, 1], [], []>} : vector<8x128xbf16>, vector<128x128xbf16>, vector<8x128xf32> -> vector<8x128xf32>
    %20 = vector.broadcast %2 : vector<1x128xf32> to vector<8x128xf32>
    %21 = arith.addf %19, %20 : vector<8x128xf32>
    %22 = arith.addf %9, %21 : vector<8x128xf32>
    %23 = vector.broadcast %3 : vector<1x128xf32> to vector<8x128xf32>
    %24 = arith.mulf %22, %23 : vector<8x128xf32>
    %25 = vector.broadcast %4 : vector<1x128xf32> to vector<8x128xf32>
    %26 = arith.addf %24, %25 : vector<8x128xf32>
    %cst_16 = arith.constant 0.000000e+00 : f32
    %27 = vector.broadcast %cst_16 : f32 to vector<8x128xf32>
    %28 = arith.maximumf %26, %27 : vector<8x128xf32>
    %29 = arith.truncf %28 : vector<8x128xf32> to vector<8x128xbf16>
    %c0_17 = arith.constant 0 : index
    %c0_18 = arith.constant 0 : index
    %30 = vector.load %arg5[%c0_17, %c0_18] : memref<128x128xbf16, #tpu.memory_space<vmem>>, vector<128x128xbf16>
    %cst_19 = arith.constant dense<0.000000e+00> : vector<8x128xf32>
    %31 = tpu.matmul %29, %30, %cst_19 {dimension_numbers = #tpu.dot_dimension_numbers<[1], [0], [0], [1], [0, 0, 1, 1], [], []>} : vector<8x128xbf16>, vector<128x128xbf16>, vector<8x128xf32> -> vector<8x128xf32>
    %c0_20 = arith.constant 0 : index
    %c0_21 = arith.constant 0 : index
    %32 = vector.load %arg7[%c0_20, %c0_21] : memref<1x128xf32, #tpu.memory_space<vmem>>, vector<1x128xf32>
    %33 = vector.broadcast %32 : vector<1x128xf32> to vector<8x128xf32>
    %34 = arith.addf %31, %33 : vector<8x128xf32>
    %c0_22 = arith.constant 0 : index
    %c0_23 = arith.constant 0 : index
    %35 = vector.load %arg8[%c0_22, %c0_23] : memref<8x128xf32, #tpu.memory_space<vmem>>, vector<8x128xf32>
    tpu.vector_store %arg8[%c0_22, %c0_23], %34 {strides = array<i32>} : memref<8x128xf32, #tpu.memory_space<vmem>>, vector<8x128xf32>,
    return
  }
  func.func @transform_0(%arg0: i32) -> (i32, i32) {
    %c0_i32 = arith.constant 0 : i32
    %c0_i32_0 = arith.constant 0 : i32
    return %arg0, %c0_i32 : i32, i32
  }
  func.func @transform_1(%arg0: i32) -> (i32, i32) {
    %c0_i32 = arith.constant 0 : i32
    %c0_i32_0 = arith.constant 0 : i32
    %c0_i32_1 = arith.constant 0 : i32
    return %c0_i32, %c0_i32_0 : i32, i32
  }
  func.func @transform_2(%arg0: i32) -> (i32, i32) {
    %c0_i32 = arith.constant 0 : i32
    %c0_i32_0 = arith.constant 0 : i32
    %c0_i32_1 = arith.constant 0 : i32
    return %c0_i32, %c0_i32_0 : i32, i32
  }
  func.func @transform_3(%arg0: i32) -> (i32, i32) {
    %c0_i32 = arith.constant 0 : i32
    %c0_i32_0 = arith.constant 0 : i32
    %c0_i32_1 = arith.constant 0 : i32
    return %c0_i32, %c0_i32_0 : i32, i32
  }
  func.func @transform_4(%arg0: i32) -> (i32, i32) {
    %c0_i32 = arith.constant 0 : i32
    %c0_i32_0 = arith.constant 0 : i32
    %c0_i32_1 = arith.constant 0 : i32
    return %c0_i32, %c0_i32_0 : i32, i32
  }
  func.func @transform_5(%arg0: i32) -> (i32, i32) {
    %c0_i32 = arith.constant 0 : i32
    %c0_i32_0 = arith.constant 0 : i32
    %c0_i32_1 = arith.constant 0 : i32
    return %c0_i32, %c0_i32_0 : i32, i32
  }
  func.func @transform_6(%arg0: i32) -> (i32, i32) {
    %c0_i32 = arith.constant 0 : i32
    %c0_i32_0 = arith.constant 0 : i32
    %c0_i32_1 = arith.constant 0 : i32
    return %c0_i32, %c0_i32_0 : i32, i32
  }
  func.func @transform_7(%arg0: i32) -> (i32, i32) {
    %c0_i32 = arith.constant 0 : i32
    %c0_i32_0 = arith.constant 0 : i32
    return %arg0, %c0_i32 : i32, i32
  }
}

</mosaic_0001>

<llo_original>
// kernel: tpu_custom_call.1
$region0: #{tpu_custom_call.1}
  #allocation0 [shape = 'u32[]', space=smem, size = 0x4, offset = 0x4, fixed_abs, tag = 'smem constant byte address 0x4 - core index']
  #allocation1 [shape = 'u32[144,128]{1,0:T(1,128)}', space=vmem, size = 0x12000, scoped, tag = 'internal scratch']
  %s0 = inlined_call_operand.hbm [shape: bf16[8,128], index: 0, kind: input, shape index: {}]
  %s1 = inlined_call_operand.hbm [shape: bf16[128,128], index: 1, kind: input, shape index: {}]
  %s2 = inlined_call_operand.hbm [shape: bf16[128,128], index: 2, kind: input, shape index: {}]
  %s3 = inlined_call_operand.hbm [shape: bf16[128,128], index: 3, kind: input, shape index: {}]
  %s4 = inlined_call_operand.hbm [shape: bf16[128,128], index: 4, kind: input, shape index: {}]
  %s5 = inlined_call_operand.vmem [shape: f32[8,128], index: 5, kind: input, shape index: {}]
  %s6 = inlined_call_operand.vmem [shape: f32[1,128], index: 6, kind: input, shape index: {}]
  %s7 = inlined_call_operand.hbm [shape: f32[8,128], index: 7, kind: output, shape index: {}]
  %s8 = sld [smem:[#allocation0]]
  $region58: #{tpu_custom_call.1} parent=0
    _
  %s10 = ssub.s32 1, %s8
  %s11 = scalar_select 0, %s10, %s8
  $region1: #{tpu_custom_call.1} parent=0
    #allocation2 [shape = 'u8[2048]{0}', space=vmem, size = 0x800, scoped, tag = 'input window, operand 0, single buffered']
    #allocation3 [shape = 's32[1]{0}', space=sflag, size = 0x4, scoped, tag = 'scoped memory for tpu_custom_call.1']
    #allocation4 [shape = 's32[1]{0}', space=sflag, size = 0x4, scoped, tag = 'scoped memory for tpu_custom_call.1']
    #allocation5 [shape = 'u8[32768]{0}', space=vmem, size = 0x8000, scoped, tag = 'input window, operand 1, single buffered']
    #allocation6 [shape = 's32[1]{0}', space=sflag, size = 0x4, scoped, tag = 'scoped memory for tpu_custom_call.1']
    #allocation7 [shape = 'u8[32768]{0}', space=vmem, size = 0x8000, scoped, tag = 'input window, operand 2, single buffered']
    #allocation8 [shape = 'u8[32768]{0}', space=vmem, size = 0x8000, scoped, tag = 'input window, operand 3, single buffered']
    #allocation9 [shape = 's32[1]{0}', space=sflag, size = 0x4, scoped, tag = 'scoped memory for tpu_custom_call.1']
    #allocation10 [shape = 'u8[32768]{0}', space=vmem, size = 0x8000, scoped, tag = 'input window, operand 4, single buffered']
    #allocation11 [shape = 'u8[4096]{0}', space=vmem, size = 0x1000, scoped, tag = 'output window, operand 0, single buffered']
    %12 = vsyncpa [#allocation3], 0
    %13 = vsyncpa [#allocation6], 0
    %14 = vsyncpa [#allocation9], 0
    %15 = vsyncpa [#allocation4], 0
    // Predicated region
    $region2: #{tpu_custom_call.1} parent=1 // pred_check
      _
    $region3: #{tpu_custom_call.1} parent=1 // pred_check_branch
      %17 = sbr.rel (0) target = $region5
    $region4: #{tpu_custom_call.1} parent=1 // pred_region
      %s19 = ssub.s32 64, 64
      %20 = vsyncadd [#allocation3], %s19
      %s22 = sshll.u32 [#allocation2], 4
      %s23 = int_to_ptr.vmem [resolvable:$true] %s22
      %25 = dma.hbm_to_vmem [thread:$0]  %s0, 64, %s23, [#allocation3]
    $region5: #{tpu_custom_call.1} parent=1 // pred_fallthru
      _
    // Predicated region
    $region6: #{tpu_custom_call.1} parent=1 // pred_check
      _
    $region7: #{tpu_custom_call.1} parent=1 // pred_check_branch
      %27 = sbr.rel (0) target = $region9
    $region8: #{tpu_custom_call.1} parent=1 // pred_region
      %s29 = ssub.s32 1024, 1024
      %30 = vsyncadd [#allocation6], %s29
      %s31 = sshll.u32 [#allocation5], 4
      %s32 = int_to_ptr.vmem [resolvable:$true] %s31
      %37 = dma.hbm_to_vmem [thread:$0]  %s1, 1024, %s32, [#allocation6], 64, 64, 4
    $region9: #{tpu_custom_call.1} parent=1 // pred_fallthru
      _
    // Predicated region
    $region10: #{tpu_custom_call.1} parent=1 // pred_check
      _
    $region11: #{tpu_custom_call.1} parent=1 // pred_check_branch
      %39 = sbr.rel (0) target = $region13
    $region12: #{tpu_custom_call.1} parent=1 // pred_region
      %s41 = ssub.s32 1024, 1024
      %42 = vsyncadd [#allocation6], %s41
      %s43 = sshll.u32 [#allocation7], 4
      %s44 = int_to_ptr.vmem [resolvable:$true] %s43
      %49 = dma.hbm_to_vmem [thread:$0]  %s2, 1024, %s44, [#allocation6], 64, 64, 4
    $region13: #{tpu_custom_call.1} parent=1 // pred_fallthru
      _
    // Predicated region
    $region14: #{tpu_custom_call.1} parent=1 // pred_check
      _
    $region15: #{tpu_custom_call.1} parent=1 // pred_check_branch
      %51 = sbr.rel (0) target = $region17
    $region16: #{tpu_custom_call.1} parent=1 // pred_region
      %s53 = ssub.s32 1024, 1024
      %54 = vsyncadd [#allocation9], %s53
      %s55 = sshll.u32 [#allocation8], 4
      %s56 = int_to_ptr.vmem [resolvable:$true] %s55
      %61 = dma.hbm_to_vmem [thread:$0]  %s3, 1024, %s56, [#allocation9], 64, 64, 4
    $region17: #{tpu_custom_call.1} parent=1 // pred_fallthru
      _
    // Predicated region
    $region18: #{tpu_custom_call.1} parent=1 // pred_check
      _
    $region19: #{tpu_custom_call.1} parent=1 // pred_check_branch
      %63 = sbr.rel (0) target = $region21
    $region20: #{tpu_custom_call.1} parent=1 // pred_region
      %s65 = ssub.s32 1024, 1024
      %66 = vsyncadd [#allocation9], %s65
      %s67 = sshll.u32 [#allocation10], 4
      %s68 = int_to_ptr.vmem [resolvable:$true] %s67
      %73 = dma.hbm_to_vmem [thread:$0]  %s4, 1024, %s68, [#allocation9], 64, 64, 4
    $region21: #{tpu_custom_call.1} parent=1 // pred_fallthru
      _
    // Predicated region
    $region22: #{tpu_custom_call.1} parent=1 // pred_check
      _
    $region23: #{tpu_custom_call.1} parent=1 // pred_check_branch
      %75 = sbr.rel (0) target = $region25
    $region24: #{tpu_custom_call.1} parent=1 // pred_region
      _
    $region25: #{tpu_custom_call.1} parent=1 // pred_fallthru
      _
    // Predicated region
    $region26: #{tpu_custom_call.1} parent=1 // pred_check
      _
    $region27: #{tpu_custom_call.1} parent=1 // pred_check_branch
      %77 = sbr.rel (0) target = $region29
    $region28: #{tpu_custom_call.1} parent=1 // pred_region
      _
    $region29: #{tpu_custom_call.1} parent=1 // pred_fallthru
      _
    // Predicated region
    $region30: #{tpu_custom_call.1} parent=1 // pred_check
      _
    $region31: #{tpu_custom_call.1} parent=1 // pred_check_branch
      %79 = sbr.rel (0) target = $region33
    $region32: #{tpu_custom_call.1} parent=1 // pred_region
      %80 = dma.done [#allocation3], 64
    $region33: #{tpu_custom_call.1} parent=1 // pred_fallthru
      _
    // Predicated region
    $region34: #{tpu_custom_call.1} parent=1 // pred_check
      _
    $region35: #{tpu_custom_call.1} parent=1 // pred_check_branch
      %82 = sbr.rel (0) target = $region37
    $region36: #{tpu_custom_call.1} parent=1 // pred_region
      %83 = dma.done [#allocation6], 1024
    $region37: #{tpu_custom_call.1} parent=1 // pred_fallthru
      _
    // Predicated region
    $region38: #{tpu_custom_call.1} parent=1 // pred_check
      _
    $region39: #{tpu_custom_call.1} parent=1 // pred_check_branch
      %85 = sbr.rel (0) target = $region41
    $region40: #{tpu_custom_call.1} parent=1 // pred_region
      %86 = dma.done [#allocation6], 1024
    $region41: #{tpu_custom_call.1} parent=1 // pred_fallthru
      _
    // Predicated region
    $region42: #{tpu_custom_call.1} parent=1 // pred_check
      _
    $region43: #{tpu_custom_call.1} parent=1 // pred_check_branch
      %88 = sbr.rel (0) target = $region45
    $region44: #{tpu_custom_call.1} parent=1 // pred_region
      %89 = dma.done [#allocation9], 1024
    $region45: #{tpu_custom_call.1} parent=1 // pred_fallthru
      _
    // Predicated region
    $region46: #{tpu_custom_call.1} parent=1 // pred_check
      _
    $region47: #{tpu_custom_call.1} parent=1 // pred_check_branch
      %91 = sbr.rel (0) target = $region49
    $region48: #{tpu_custom_call.1} parent=1 // pred_region
      %92 = dma.done [#allocation9], 1024
    $region49: #{tpu_custom_call.1} parent=1 // pred_fallthru
      _
    %v94 = vld [vmem:[%s5] sm:$0x1]
    %v95 = vld [vmem:[%s5 + $0x1] sm:$0x1]
    %v96 = vld [vmem:[%s5 + $0x2] sm:$0x1]
    %v97 = vld [vmem:[%s5 + $0x3] sm:$0x1]
    %v98 = vld [vmem:[%s5 + $0x4] sm:$0x1]
    %v99 = vld [vmem:[#allocation2] sm:$0xf]
    %v100 = vld [vmem:[#allocation5] sm:$0xf]
    %v101 = vld [vmem:[#allocation5 + $0x4] sm:$0xf]
    %v102 = vld [vmem:[#allocation5 + $0x8] sm:$0xf]
    %v103 = vld [vmem:[#allocation5 + $0xc] sm:$0xf]
    %v104 = vld [vmem:[#allocation5 + $0x10] sm:$0xf]
    %v105 = vld [vmem:[#allocation5 + $0x14] sm:$0xf]
    %v106 = vld [vmem:[#allocation5 + $0x18] sm:$0xf]
    %v107 = vld [vmem:[#allocation5 + $0x1c] sm:$0xf]
    %v108 = vld [vmem:[#allocation5 + $0x20] sm:$0xf]
    %v109 = vld [vmem:[#allocation5 + $0x24] sm:$0xf]
    %v110 = vld [vmem:[#allocation5 + $0x28] sm:$0xf]
    %v111 = vld [vmem:[#allocation5 + $0x2c] sm:$0xf]
    %v112 = vld [vmem:[#allocation5 + $0x30] sm:$0xf]
    %v113 = vld [vmem:[#allocation5 + $0x34] sm:$0xf]
    %v114 = vld [vmem:[#allocation5 + $0x38] sm:$0xf]
    %v115 = vld [vmem:[#allocation5 + $0x3c] sm:$0xf]
    %v116 = vlaneseq
    %v117 = vshrl.u32 %v116, 7
    %v118 = vsub.s32 0, %v117
    %v119 = vrot.slane %v94, %v118
    %v136 = vunpack.c.l.b16 %v100
    %v137 = vunpack.c.l.b16 %v101
    %v138 = vunpack.c.l.b16 %v102
    %v139 = vunpack.c.l.b16 %v103
    %v140 = vunpack.c.l.b16 %v104
    %v141 = vunpack.c.l.b16 %v105
    %v142 = vunpack.c.l.b16 %v106
    %v143 = vunpack.c.l.b16 %v107
    %v144 = vunpack.c.l.b16 %v108
    %v145 = vunpack.c.l.b16 %v109
    %v146 = vunpack.c.l.b16 %v110
    %v147 = vunpack.c.l.b16 %v111
    %v148 = vunpack.c.l.b16 %v112
    %v149 = vunpack.c.l.b16 %v113
    %v150 = vunpack.c.l.b16 %v114
    %v151 = vunpack.c.l.b16 %v115
    %v152 = vpack.c.b16 %v137, %v136
    %v153 = vpack.c.b16 %v139, %v138
    %v154 = vpack.c.b16 %v141, %v140
    %v155 = vpack.c.b16 %v143, %v142
    %v156 = vpack.c.b16 %v145, %v144
    %v157 = vpack.c.b16 %v147, %v146
    %v158 = vpack.c.b16 %v149, %v148
    %v159 = vpack.c.b16 %v151, %v150
    %168 = vmatprep.subr.bf16.mxu0 0
    %169 = vmatpush1.bf16.msra.mxu0 %v152
    %170 = vmatprep.subr.bf16.mxu0 0
    %171 = vmatpush1.bf16.msra.mxu0 %v153
    %172 = vmatprep.subr.bf16.mxu0 0
    %173 = vmatpush1.bf16.msra.mxu0 %v154
    %174 = vmatprep.subr.bf16.mxu0 0
    %175 = vmatpush1.bf16.msra.mxu0 %v155
    %176 = vmatprep.subr.bf16.mxu0 0
    %177 = vmatpush1.bf16.msra.mxu0 %v156
    %178 = vmatprep.subr.bf16.mxu0 0
    %179 = vmatpush1.bf16.msra.mxu0 %v157
    %180 = vmatprep.subr.bf16.mxu0 0
    %181 = vmatpush1.bf16.msra.mxu0 %v158
    %182 = vmatprep.subr.bf16.mxu0 0
    %183 = vmatpush1.bf16.msra.mxu0 %v159
    %184 = vmatprep.subr.bf16.mxu0 0
    %185 = vmatpush1.bf16.msra.mxu0 0
    %186 = vmatprep.subr.bf16.mxu0 0
    %187 = vmatpush1.bf16.msra.mxu0 0
    %188 = vmatprep.subr.bf16.mxu0 0
    %189 = vmatpush1.bf16.msra.mxu0 0
    %190 = vmatprep.subr.bf16.mxu0 0
    %191 = vmatpush1.bf16.msra.mxu0 0
    %192 = vmatprep.subr.bf16.mxu0 0
    %193 = vmatpush1.bf16.msra.mxu0 0
    %194 = vmatprep.subr.bf16.mxu0 0
    %195 = vmatpush1.bf16.msra.mxu0 0
    %196 = vmatprep.subr.bf16.mxu0 0
    %197 = vmatpush1.bf16.msra.mxu0 0
    %198 = vmatprep.subr.bf16.mxu0 0
    %199 = vmatpush1.bf16.msra.mxu0 0
    %200 = vmatprep.mubr.bf16.mxu0 0
    %201 = vmatmul.mubr.bf16.gmra.mrb[0].mxu0 %v99
    %v202 = vpop.f32.mrb[0].mxu0
    %v203 = vadd.f32 %v119, %v202
    %v204 = vpop.f32.mrb[0].mxu0
    %v205 = vpop.f32.mrb[0].mxu0
    %v206 = vpop.f32.mrb[0].mxu0
    %207 = vdwg.mxu0
    %v208 = vpack.c.bf16 %v203, %v203
    %v209 = vld [vmem:[#allocation7] sm:$0xf]
    %v210 = vld [vmem:[#allocation7 + $0x4] sm:$0xf]
    %v211 = vld [vmem:[#allocation7 + $0x8] sm:$0xf]
    %v212 = vld [vmem:[#allocation7 + $0xc] sm:$0xf]
    %v213 = vld [vmem:[#allocation7 + $0x10] sm:$0xf]
    %v214 = vld [vmem:[#allocation7 + $0x14] sm:$0xf]
    %v215 = vld [vmem:[#allocation7 + $0x18] sm:$0xf]
    %v216 = vld [vmem:[#allocation7 + $0x1c] sm:$0xf]
    %v217 = vld [vmem:[#allocation7 + $0x20] sm:$0xf]
    %v218 = vld [vmem:[#allocation7 + $0x24] sm:$0xf]
    %v219 = vld [vmem:[#allocation7 + $0x28] sm:$0xf]
    %v220 = vld [vmem:[#allocation7 + $0x2c] sm:$0xf]
    %v221 = vld [vmem:[#allocation7 + $0x30] sm:$0xf]
    %v222 = vld [vmem:[#allocation7 + $0x34] sm:$0xf]
    %v223 = vld [vmem:[#allocation7 + $0x38] sm:$0xf]
    %v224 = vld [vmem:[#allocation7 + $0x3c] sm:$0xf]
    %v225 = vlaneseq
    %v226 = vshrl.u32 %v225, 7
    %v227 = vsub.s32 0, %v226
    %v228 = vrot.slane %v95, %v227
    %v245 = vunpack.c.l.b16 %v209
    %v246 = vunpack.c.l.b16 %v210
    %v247 = vunpack.c.l.b16 %v211
    %v248 = vunpack.c.l.b16 %v212
    %v249 = vunpack.c.l.b16 %v213
    %v250 = vunpack.c.l.b16 %v214
    %v251 = vunpack.c.l.b16 %v215
    %v252 = vunpack.c.l.b16 %v216
    %v253 = vunpack.c.l.b16 %v217
    %v254 = vunpack.c.l.b16 %v218
    %v255 = vunpack.c.l.b16 %v219
    %v256 = vunpack.c.l.b16 %v220
    %v257 = vunpack.c.l.b16 %v221
    %v258 = vunpack.c.l.b16 %v222
    %v259 = vunpack.c.l.b16 %v223
    %v260 = vunpack.c.l.b16 %v224
    %v261 = vpack.c.b16 %v246, %v245
    %v262 = vpack.c.b16 %v248, %v247
    %v263 = vpack.c.b16 %v250, %v249
    %v264 = vpack.c.b16 %v252, %v251
    %v265 = vpack.c.b16 %v254, %v253
    %v266 = vpack.c.b16 %v256, %v255
    %v267 = vpack.c.b16 %v258, %v257
    %v268 = vpack.c.b16 %v260, %v259
    %277 = vmatprep.subr.bf16.mxu0 0
    %278 = vmatpush1.bf16.msra.mxu0 %v261
    %279 = vmatprep.subr.bf16.mxu0 0
    %280 = vmatpush1.bf16.msra.mxu0 %v262
    %281 = vmatprep.subr.bf16.mxu0 0
    %282 = vmatpush1.bf16.msra.mxu0 %v263
    %283 = vmatprep.subr.bf16.mxu0 0
    %284 = vmatpush1.bf16.msra.mxu0 %v264
    %285 = vmatprep.subr.bf16.mxu0 0
    %286 = vmatpush1.bf16.msra.mxu0 %v265
    %287 = vmatprep.subr.bf16.mxu0 0
    %288 = vmatpush1.bf16.msra.mxu0 %v266
    %289 = vmatprep.subr.bf16.mxu0 0
    %290 = vmatpush1.bf16.msra.mxu0 %v267
    %291 = vmatprep.subr.bf16.mxu0 0
    %292 = vmatpush1.bf16.msra.mxu0 %v268
    %293 = vmatprep.subr.bf16.mxu0 0
    %294 = vmatpush1.bf16.msra.mxu0 0
    %295 = vmatprep.subr.bf16.mxu0 0
    %296 = vmatpush1.bf16.msra.mxu0 0
    %297 = vmatprep.subr.bf16.mxu0 0
    %298 = vmatpush1.bf16.msra.mxu0 0
    %299 = vmatprep.subr.bf16.mxu0 0
    %300 = vmatpush1.bf16.msra.mxu0 0
    %301 = vmatprep.subr.bf16.mxu0 0
    %302 = vmatpush1.bf16.msra.mxu0 0
    %303 = vmatprep.subr.bf16.mxu0 0
    %304 = vmatpush1.bf16.msra.mxu0 0
    %305 = vmatprep.subr.bf16.mxu0 0
    %306 = vmatpush1.bf16.msra.mxu0 0
    %307 = vmatprep.subr.bf16.mxu0 0
    %308 = vmatpush1.bf16.msra.mxu0 0
    %309 = vmatprep.mubr.bf16.mxu0 0
    %310 = vmatmul.mubr.bf16.gmra.mrb[0].mxu0 %v208
    %v311 = vpop.f32.mrb[0].mxu0
    %v312 = vadd.f32 %v228, %v311
    %v313 = vpop.f32.mrb[0].mxu0
    %v314 = vpop.f32.mrb[0].mxu0
    %v315 = vpop.f32.mrb[0].mxu0
    %316 = vdwg.mxu0
    %v317 = vmax.f32 %v312, 0.0
    %v318 = vpack.c.bf16 %v317, %v317
    %v319 = vld [vmem:[#allocation8] sm:$0xf]
    %v320 = vld [vmem:[#allocation8 + $0x4] sm:$0xf]
    %v321 = vld [vmem:[#allocation8 + $0x8] sm:$0xf]
    %v322 = vld [vmem:[#allocation8 + $0xc] sm:$0xf]
    %v323 = vld [vmem:[#allocation8 + $0x10] sm:$0xf]
    %v324 = vld [vmem:[#allocation8 + $0x14] sm:$0xf]
    %v325 = vld [vmem:[#allocation8 + $0x18] sm:$0xf]
    %v326 = vld [vmem:[#allocation8 + $0x1c] sm:$0xf]
    %v327 = vld [vmem:[#allocation8 + $0x20] sm:$0xf]
    %v328 = vld [vmem:[#allocation8 + $0x24] sm:$0xf]
    %v329 = vld [vmem:[#allocation8 + $0x28] sm:$0xf]
    %v330 = vld [vmem:[#allocation8 + $0x2c] sm:$0xf]
    %v331 = vld [vmem:[#allocation8 + $0x30] sm:$0xf]
    %v332 = vld [vmem:[#allocation8 + $0x34] sm:$0xf]
    %v333 = vld [vmem:[#allocation8 + $0x38] sm:$0xf]
    %v334 = vld [vmem:[#allocation8 + $0x3c] sm:$0xf]
    %v335 = vlaneseq
    %v336 = vshrl.u32 %v335, 7
    %v337 = vsub.s32 0, %v336
    %v338 = vrot.slane %v96, %v337
    %v355 = vunpack.c.l.b16 %v319
    %v356 = vunpack.c.l.b16 %v320
    %v357 = vunpack.c.l.b16 %v321
    %v358 = vunpack.c.l.b16 %v322
    %v359 = vunpack.c.l.b16 %v323
    %v360 = vunpack.c.l.b16 %v324
    %v361 = vunpack.c.l.b16 %v325
    %v362 = vunpack.c.l.b16 %v326
    %v363 = vunpack.c.l.b16 %v327
    %v364 = vunpack.c.l.b16 %v328
    %v365 = vunpack.c.l.b16 %v329
    %v366 = vunpack.c.l.b16 %v330
    %v367 = vunpack.c.l.b16 %v331
    %v368 = vunpack.c.l.b16 %v332
    %v369 = vunpack.c.l.b16 %v333
    %v370 = vunpack.c.l.b16 %v334
    %v371 = vpack.c.b16 %v356, %v355
    %v372 = vpack.c.b16 %v358, %v357
    %v373 = vpack.c.b16 %v360, %v359
    %v374 = vpack.c.b16 %v362, %v361
    %v375 = vpack.c.b16 %v364, %v363
    %v376 = vpack.c.b16 %v366, %v365
    %v377 = vpack.c.b16 %v368, %v367
    %v378 = vpack.c.b16 %v370, %v369
    %387 = vmatprep.subr.bf16.mxu0 0
    %388 = vmatpush1.bf16.msra.mxu0 %v371
    %389 = vmatprep.subr.bf16.mxu0 0
    %390 = vmatpush1.bf16.msra.mxu0 %v372
    %391 = vmatprep.subr.bf16.mxu0 0
    %392 = vmatpush1.bf16.msra.mxu0 %v373
    %393 = vmatprep.subr.bf16.mxu0 0
    %394 = vmatpush1.bf16.msra.mxu0 %v374
    %395 = vmatprep.subr.bf16.mxu0 0
    %396 = vmatpush1.bf16.msra.mxu0 %v375
    %397 = vmatprep.subr.bf16.mxu0 0
    %398 = vmatpush1.bf16.msra.mxu0 %v376
    %399 = vmatprep.subr.bf16.mxu0 0
    %400 = vmatpush1.bf16.msra.mxu0 %v377
    %401 = vmatprep.subr.bf16.mxu0 0
    %402 = vmatpush1.bf16.msra.mxu0 %v378
    %403 = vmatprep.subr.bf16.mxu0 0
    %404 = vmatpush1.bf16.msra.mxu0 0
    %405 = vmatprep.subr.bf16.mxu0 0
    %406 = vmatpush1.bf16.msra.mxu0 0
    %407 = vmatprep.subr.bf16.mxu0 0
    %408 = vmatpush1.bf16.msra.mxu0 0
    %409 = vmatprep.subr.bf16.mxu0 0
    %410 = vmatpush1.bf16.msra.mxu0 0
    %411 = vmatprep.subr.bf16.mxu0 0
    %412 = vmatpush1.bf16.msra.mxu0 0
    %413 = vmatprep.subr.bf16.mxu0 0
    %414 = vmatpush1.bf16.msra.mxu0 0
    %415 = vmatprep.subr.bf16.mxu0 0
    %416 = vmatpush1.bf16.msra.mxu0 0
    %417 = vmatprep.subr.bf16.mxu0 0
    %418 = vmatpush1.bf16.msra.mxu0 0
    %419 = vmatprep.mubr.bf16.mxu0 0
    %420 = vmatmul.mubr.bf16.gmra.mrb[0].mxu0 %v318
    %v421 = vpop.f32.mrb[0].mxu0
    %v422 = vadd.f32 %v338, %v421
    %v423 = vpop.f32.mrb[0].mxu0
    %v424 = vpop.f32.mrb[0].mxu0
    %v425 = vpop.f32.mrb[0].mxu0
    %426 = vdwg.mxu0
    %v427 = vadd.f32 %v203, %v422
    %v428 = vlaneseq
    %v429 = vshrl.u32 %v428, 7
    %v430 = vsub.s32 0, %v429
    %v431 = vrot.slane %v97, %v430
    %v432 = vmul.f32 %v427, %v431
    %v433 = vlaneseq
    %v434 = vshrl.u32 %v433, 7
    %v435 = vsub.s32 0, %v434
    %v436 = vrot.slane %v98, %v435
    %v437 = vadd.f32 %v432, %v436
    %v438 = vmax.f32 %v437, 0.0
    %v439 = vpack.c.bf16 %v438, %v438
    %v440 = vld [vmem:[#allocation10] sm:$0xf]
    %v441 = vld [vmem:[#allocation10 + $0x4] sm:$0xf]
    %v442 = vld [vmem:[#allocation10 + $0x8] sm:$0xf]
    %v443 = vld [vmem:[#allocation10 + $0xc] sm:$0xf]
    %v444 = vld [vmem:[#allocation10 + $0x10] sm:$0xf]
    %v445 = vld [vmem:[#allocation10 + $0x14] sm:$0xf]
    %v446 = vld [vmem:[#allocation10 + $0x18] sm:$0xf]
    %v447 = vld [vmem:[#allocation10 + $0x1c] sm:$0xf]
    %v448 = vld [vmem:[#allocation10 + $0x20] sm:$0xf]
    %v449 = vld [vmem:[#allocation10 + $0x24] sm:$0xf]
    %v450 = vld [vmem:[#allocation10 + $0x28] sm:$0xf]
    %v451 = vld [vmem:[#allocation10 + $0x2c] sm:$0xf]
    %v452 = vld [vmem:[#allocation10 + $0x30] sm:$0xf]
    %v453 = vld [vmem:[#allocation10 + $0x34] sm:$0xf]
    %v454 = vld [vmem:[#allocation10 + $0x38] sm:$0xf]
    %v455 = vld [vmem:[#allocation10 + $0x3c] sm:$0xf]
    %v456 = vld [vmem:[%s6] sm:$0x1]
    %v458 = vlaneseq
    %v459 = vshrl.u32 %v458, 7
    %v460 = vsub.s32 0, %v459
    %v461 = vrot.slane %v456, %v460
    %v479 = vunpack.c.l.b16 %v440
    %v480 = vunpack.c.l.b16 %v441
    %v481 = vunpack.c.l.b16 %v442
    %v482 = vunpack.c.l.b16 %v443
    %v483 = vunpack.c.l.b16 %v444
    %v484 = vunpack.c.l.b16 %v445
    %v485 = vunpack.c.l.b16 %v446
    %v486 = vunpack.c.l.b16 %v447
    %v487 = vunpack.c.l.b16 %v448
    %v488 = vunpack.c.l.b16 %v449
    %v489 = vunpack.c.l.b16 %v450
    %v490 = vunpack.c.l.b16 %v451
    %v491 = vunpack.c.l.b16 %v452
    %v492 = vunpack.c.l.b16 %v453
    %v493 = vunpack.c.l.b16 %v454
    %v494 = vunpack.c.l.b16 %v455
    %v495 = vpack.c.b16 %v480, %v479
    %v496 = vpack.c.b16 %v482, %v481
    %v497 = vpack.c.b16 %v484, %v483
    %v498 = vpack.c.b16 %v486, %v485
    %v499 = vpack.c.b16 %v488, %v487
    %v500 = vpack.c.b16 %v490, %v489
    %v501 = vpack.c.b16 %v492, %v491
    %v502 = vpack.c.b16 %v494, %v493
    %511 = vmatprep.subr.bf16.mxu0 0
    %512 = vmatpush1.bf16.msra.mxu0 %v495
    %513 = vmatprep.subr.bf16.mxu0 0
    %514 = vmatpush1.bf16.msra.mxu0 %v496
    %515 = vmatprep.subr.bf16.mxu0 0
    %516 = vmatpush1.bf16.msra.mxu0 %v497
    %517 = vmatprep.subr.bf16.mxu0 0
    %518 = vmatpush1.bf16.msra.mxu0 %v498
    %519 = vmatprep.subr.bf16.mxu0 0
    %520 = vmatpush1.bf16.msra.mxu0 %v499
    %521 = vmatprep.subr.bf16.mxu0 0
    %522 = vmatpush1.bf16.msra.mxu0 %v500
    %523 = vmatprep.subr.bf16.mxu0 0
    %524 = vmatpush1.bf16.msra.mxu0 %v501
    %525 = vmatprep.subr.bf16.mxu0 0
    %526 = vmatpush1.bf16.msra.mxu0 %v502
    %527 = vmatprep.subr.bf16.mxu0 0
    %528 = vmatpush1.bf16.msra.mxu0 0
    %529 = vmatprep.subr.bf16.mxu0 0
    %530 = vmatpush1.bf16.msra.mxu0 0
    %531 = vmatprep.subr.bf16.mxu0 0
    %532 = vmatpush1.bf16.msra.mxu0 0
    %533 = vmatprep.subr.bf16.mxu0 0
    %534 = vmatpush1.bf16.msra.mxu0 0
    %535 = vmatprep.subr.bf16.mxu0 0
    %536 = vmatpush1.bf16.msra.mxu0 0
    %537 = vmatprep.subr.bf16.mxu0 0
    %538 = vmatpush1.bf16.msra.mxu0 0
    %539 = vmatprep.subr.bf16.mxu0 0
    %540 = vmatpush1.bf16.msra.mxu0 0
    %541 = vmatprep.subr.bf16.mxu0 0
    %542 = vmatpush1.bf16.msra.mxu0 0
    %543 = vmatprep.mubr.bf16.mxu0 0
    %544 = vmatmul.mubr.bf16.gmra.mrb[0].mxu0 %v439
    %v545 = vpop.f32.mrb[0].mxu0
    %v546 = vadd.f32 %v461, %v545
    %v547 = vpop.f32.mrb[0].mxu0
    %v548 = vpop.f32.mrb[0].mxu0
    %v549 = vpop.f32.mrb[0].mxu0
    %550 = vdwg.mxu0
    %551 = vst [vmem:[#allocation11] sm:$0xff] %v546
    // Predicated region
    $region50: #{tpu_custom_call.1} parent=1 // pred_check
      _
    $region51: #{tpu_custom_call.1} parent=1 // pred_check_branch
      %553 = sbr.rel (0) target = $region53
    $region52: #{tpu_custom_call.1} parent=1 // pred_region
      %s555 = ssub.s32 128, 128
      %556 = vsyncadd [#allocation4], %s555
      %s558 = sshll.u32 [#allocation11], 4
      %s559 = int_to_ptr.vmem [resolvable:$true] %s558
      %561 = dma.vmem_to_hbm [thread:$0]  %s559, 128, %s7, [#allocation4]
    $region53: #{tpu_custom_call.1} parent=1 // pred_fallthru
      _
    // Predicated region
    $region54: #{tpu_custom_call.1} parent=1 // pred_check
      _
    $region55: #{tpu_custom_call.1} parent=1 // pred_check_branch
      %563 = sbr.rel (0) target = $region57
    $region56: #{tpu_custom_call.1} parent=1 // pred_region
      %564 = dma.done [#allocation4], 128
    $region57: #{tpu_custom_call.1} parent=1 // pred_fallthru
      _
    %565 = vsyncpa [#allocation3], 1
    %566 = vsyncpa [#allocation6], 1
    %567 = vsyncpa [#allocation9], 1
    %568 = vsyncpa [#allocation4], 1

</llo_original>
